<compile_context>
chip_gen: v7x
topology: tpu7x:2x2x1
jax: 0.10.0
libtpu: 0.0.40
codegen_flags: <defaults>
</compile_context>

<pallas_src>
import functools

import jax
import jax.numpy as jnp
import numpy as np
from jax.experimental import pallas as pl
from jax.experimental.pallas import tpu as pltpu


def _nearest_idx(out_len, in_len):
    """PyTorch F.interpolate(mode='nearest') source indices: floor(i * in/out)."""
    scale = np.float32(in_len) / np.float32(out_len)
    idx = np.floor(np.arange(out_len, dtype=np.float32) * scale).astype(np.int64)
    return np.minimum(idx, in_len - 1)


def _make_kernel(N, Cin, Cout, K, Hp, L, segments):
    inv_k = np.float32(1.0 / K)

    def kernel(x_ref, w_ref, b_ref, o_ref):
        # x_ref: (K*Cin, N*Hp)   w_ref: (Cout, Cin)   b_ref: (Cout, 1)
        # o_ref: (Cout, N*L)

        # ---- AvgPool along H: K static sublane slabs summed on the VPU ----
        pooled = x_ref[0:Cin, :]
        for k in range(1, K):
            pooled = pooled + x_ref[k * Cin:(k + 1) * Cin, :]
        pooled = pooled * inv_k                                    # (Cin, N*Hp)

        # ---- 1x1 conv == per-position channel matmul, whole batch at once ----
        y = jnp.dot(w_ref[...], pooled,
                    preferred_element_type=jnp.float32)            # (Cout, N*Hp)
        y = jnp.maximum(y + b_ref[...], 0.0)                       # bias + ReLU

        # ---- nearest upsample along positions: idx is non-decreasing, so each
        #      source column owns a contiguous run of output columns.  Replicate
        #      it with static lane-sliced broadcast stores (no MXU, no G matrix).
        for n in range(N):
            for (h, s, e) in segments:
                col = y[:, n * Hp + h:n * Hp + h + 1]              # (Cout, 1)
                o_ref[:, n * L + s:n * L + e] = jnp.broadcast_to(
                    col, (Cout, e - s))

    return kernel


@functools.partial(jax.jit, static_argnums=(3, 4))
def ms_block_forward(x, conv_w, conv_b, pool_level, txt_length):
    """x: (N, Cin, H, W) NCHW.  Returns (N, Cout, txt_length, 1)."""
    N, Cin, H, W = x.shape
    Cout = conv_w.shape[0]
    K = 5 * pool_level
    Hp = H // K                 # AvgPool2d drops the remainder (ceil_mode=False)
    L = txt_length

    # Static nearest-neighbour map and its contiguous output segments (numpy at
    # trace time -> zero per-call XLA ops for operator setup).
    idx = _nearest_idx(L, Hp)
    segments = []
    for h in range(Hp):
        ls = np.nonzero(idx == h)[0]
        if ls.size:
            segments.append((int(h), int(ls[0]), int(ls[-1]) + 1))

    # Repack input: w=0 column only, crop pool remainder, lane-dense layout
    # (K*Cin, N*Hp) -> one small whole-batch DMA instead of per-batch padded tiles.
    xc = x[:, :, : Hp * K, 0].astype(jnp.float32)                  # (N, Cin, Hp*K)
    xc = xc.reshape(N, Cin, Hp, K)                                 # (n, c, h, k)
    x_packed = jnp.transpose(xc, (3, 1, 0, 2)).reshape(K * Cin, N * Hp)

    w_mat = conv_w[:, :, 0, 0].astype(jnp.float32)                 # (Cout, Cin)
    b_col = conv_b.reshape(Cout, 1).astype(jnp.float32)            # (Cout, 1)

    kernel = _make_kernel(N, Cin, Cout, K, Hp, L, segments)

    # Single grid step: the whole (tiny) batch in one invocation.  For large
    # production N, add a leading batch-block grid axis with
    # dimension_semantics=("parallel",) so v7x's 2 TensorCores share the work;
    # at N=2 a single step is strictly cheaper on every generation.
    out = pl.pallas_call(
        kernel,
        out_shape=jax.ShapeDtypeStruct((Cout, N * L), jnp.float32),
        in_specs=[
            pl.BlockSpec(memory_space=pltpu.MemorySpace.VMEM),
            pl.BlockSpec(memory_space=pltpu.MemorySpace.VMEM),
            pl.BlockSpec(memory_space=pltpu.MemorySpace.VMEM),
        ],
        out_specs=pl.BlockSpec(memory_space=pltpu.MemorySpace.VMEM),
    )(x_packed, w_mat, b_col)

    # (Cout, N*L) -> NCHW (N, Cout, txt_length, 1)
    return jnp.transpose(out.reshape(Cout, N, L), (1, 0, 2))[..., None]


def ms_block_ref(x, conv_w, conv_b, pool_level, txt_length):
    """Pure-JAX reference matching the PyTorch module exactly."""
    N, Cin, H, W = x.shape
    K = 5 * pool_level
    Hp = H // K
    xp = x[:, :, : Hp * K, :].reshape(N, Cin, Hp, K, W).mean(axis=3)   # AvgPool2d
    y = jnp.einsum('nchw,oc->nohw', xp, conv_w[:, :, 0, 0]) \
        + conv_b[None, :, None, None]                                  # 1x1 conv
    y = jnp.maximum(y, 0.0)                                            # ReLU
    hidx = _nearest_idx(txt_length, Hp)                                # nearest interp
    widx = _nearest_idx(1, W)
    return y[:, :, hidx][:, :, :, widx]


if __name__ == "__main__":
    # Small shapes consistent with the module (txt features: NCHW with W=1).
    N, Cin, Cout = 2, 4, 8
    H, W = 40, 1
    pool_level = 1          # pool kernel/stride = (5, 1)
    txt_length = 20

    key = jax.random.PRNGKey(0)
    kx, kw = jax.random.split(key)
    x = jax.random.normal(kx, (N, Cin, H, W), dtype=jnp.float32)

    # _init_weight: conv weight ~ N(0, 0.01), bias = 0 (deterministic, in-script).
    conv_w = 0.01 * jax.random.normal(kw, (Cout, Cin, 1, 1), dtype=jnp.float32)
    conv_b = jnp.zeros((Cout,), dtype=jnp.float32)

    out = ms_block_forward(x, conv_w, conv_b, pool_level, txt_length)
    out = jax.block_until_ready(out)

    ref = ms_block_ref(x, conv_w, conv_b, pool_level, txt_length)
    assert out.shape == (N, Cout, txt_length, 1), out.shape
    assert jnp.allclose(out, ref, atol=1e-5, rtol=1e-5), \
        float(jnp.max(jnp.abs(out - ref)))

    print("KERNEL_OK")
</pallas_src>

<mosaic_0001>
module attributes {stable_mosaic.version = 11 : i64} {
  func.func @kernel(%arg0: memref<20x16xf32, #tpu.memory_space<vmem>>, %arg1: memref<8x4xf32, #tpu.memory_space<vmem>>, %arg2: memref<8x1xf32, #tpu.memory_space<vmem>>, %arg3: memref<8x40xf32, #tpu.memory_space<vmem>>) attributes {dimension_semantics = [], scalar_prefetch = 0 : i64, scratch_operands = 0 : i64, tpu.core_type = #tpu.core_type<tc>} {
    %c0 = arith.constant 0 : index
    %c0_0 = arith.constant 0 : index
    %0 = vector.load %arg0[%c0, %c0_0] : memref<20x16xf32, #tpu.memory_space<vmem>>, vector<4x16xf32>
    %c4 = arith.constant 4 : index
    %c0_1 = arith.constant 0 : index
    %1 = vector.load %arg0[%c4, %c0_1] : memref<20x16xf32, #tpu.memory_space<vmem>>, vector<4x16xf32>
    %2 = arith.addf %0, %1 : vector<4x16xf32>
    %c8 = arith.constant 8 : index
    %c0_2 = arith.constant 0 : index
    %3 = vector.load %arg0[%c8, %c0_2] : memref<20x16xf32, #tpu.memory_space<vmem>>, vector<4x16xf32>
    %4 = arith.addf %2, %3 : vector<4x16xf32>
    %c12 = arith.constant 12 : index
    %c0_3 = arith.constant 0 : index
    %5 = vector.load %arg0[%c12, %c0_3] : memref<20x16xf32, #tpu.memory_space<vmem>>, vector<4x16xf32>
    %6 = arith.addf %4, %5 : vector<4x16xf32>
    %c16 = arith.constant 16 : index
    %c0_4 = arith.constant 0 : index
    %7 = vector.load %arg0[%c16, %c0_4] : memref<20x16xf32, #tpu.memory_space<vmem>>, vector<4x16xf32>
    %8 = arith.addf %6, %7 : vector<4x16xf32>
    %cst = arith.constant 2.000000e-01 : f32
    %9 = vector.broadcast %cst : f32 to vector<4x16xf32>
    %10 = arith.mulf %8, %9 : vector<4x16xf32>
    %c0_5 = arith.constant 0 : index
    %c0_6 = arith.constant 0 : index
    %11 = vector.load %arg1[%c0_5, %c0_6] : memref<8x4xf32, #tpu.memory_space<vmem>>, vector<8x4xf32>
    %cst_7 = arith.constant dense<0.000000e+00> : vector<8x16xf32>
    %12 = tpu.matmul %11, %10, %cst_7 {dimension_numbers = #tpu.dot_dimension_numbers<[1], [0], [0], [1], [0, 0, 1, 1], [], []>} : vector<8x4xf32>, vector<4x16xf32>, vector<8x16xf32> -> vector<8x16xf32>
    %c0_8 = arith.constant 0 : index
    %c0_9 = arith.constant 0 : index
    %13 = vector.load %arg2[%c0_8, %c0_9] : memref<8x1xf32, #tpu.memory_space<vmem>>, vector<8x1xf32>
    %14 = vector.broadcast %13 : vector<8x1xf32> to vector<8x16xf32>
    %15 = arith.addf %12, %14 : vector<8x16xf32>
    %cst_10 = arith.constant 0.000000e+00 : f32
    %16 = vector.broadcast %cst_10 : f32 to vector<8x16xf32>
    %17 = arith.maximumf %15, %16 : vector<8x16xf32>
    %18 = vector.extract_strided_slice %17 {offsets = [0, 0], sizes = [8, 1], strides = [1, 1]} : vector<8x16xf32> to vector<8x1xf32>
    %19 = vector.shape_cast %18 : vector<8x1xf32> to vector<8x1xf32>
    %20 = vector.broadcast %19 : vector<8x1xf32> to vector<8x3xf32>
    %c0_11 = arith.constant 0 : index
    %c0_12 = arith.constant 0 : index
    %21 = vector.load %arg3[%c0_11, %c0_12] : memref<8x40xf32, #tpu.memory_space<vmem>>, vector<8x3xf32>
    tpu.vector_store %arg3[%c0_11, %c0_12], %20 {strides = array<i32>} : memref<8x40xf32, #tpu.memory_space<vmem>>, vector<8x3xf32>,
    %22 = vector.extract_strided_slice %17 {offsets = [0, 1], sizes = [8, 1], strides = [1, 1]} : vector<8x16xf32> to vector<8x1xf32>
    %23 = vector.shape_cast %22 : vector<8x1xf32> to vector<8x1xf32>
    %24 = vector.broadcast %23 : vector<8x1xf32> to vector<8x2xf32>
    %c0_13 = arith.constant 0 : index
    %c3 = arith.constant 3 : index
    %25 = vector.load %arg3[%c0_13, %c3] : memref<8x40xf32, #tpu.memory_space<vmem>>, vector<8x2xf32>
    tpu.vector_store %arg3[%c0_13, %c3], %24 {strides = array<i32>} : memref<8x40xf32, #tpu.memory_space<vmem>>, vector<8x2xf32>,
    %26 = vector.extract_strided_slice %17 {offsets = [0, 2], sizes = [8, 1], strides = [1, 1]} : vector<8x16xf32> to vector<8x1xf32>
    %27 = vector.shape_cast %26 : vector<8x1xf32> to vector<8x1xf32>
    %28 = vector.broadcast %27 : vector<8x1xf32> to vector<8x3xf32>
    %c0_14 = arith.constant 0 : index
    %c5 = arith.constant 5 : index
    %29 = vector.load %arg3[%c0_14, %c5] : memref<8x40xf32, #tpu.memory_space<vmem>>, vector<8x3xf32>
    tpu.vector_store %arg3[%c0_14, %c5], %28 {strides = array<i32>} : memref<8x40xf32, #tpu.memory_space<vmem>>, vector<8x3xf32>,
    %30 = vector.extract_strided_slice %17 {offsets = [0, 3], sizes = [8, 1], strides = [1, 1]} : vector<8x16xf32> to vector<8x1xf32>
    %31 = vector.shape_cast %30 : vector<8x1xf32> to vector<8x1xf32>
    %32 = vector.broadcast %31 : vector<8x1xf32> to vector<8x2xf32>
    %c0_15 = arith.constant 0 : index
    %c8_16 = arith.constant 8 : index
    %33 = vector.load %arg3[%c0_15, %c8_16] : memref<8x40xf32, #tpu.memory_space<vmem>>, vector<8x2xf32>
    tpu.vector_store %arg3[%c0_15, %c8_16], %32 {strides = array<i32>} : memref<8x40xf32, #tpu.memory_space<vmem>>, vector<8x2xf32>,
    %34 = vector.extract_strided_slice %17 {offsets = [0, 4], sizes = [8, 1], strides = [1, 1]} : vector<8x16xf32> to vector<8x1xf32>
    %35 = vector.shape_cast %34 : vector<8x1xf32> to vector<8x1xf32>
    %36 = vector.broadcast %35 : vector<8x1xf32> to vector<8x3xf32>
    %c0_17 = arith.constant 0 : index
    %c10 = arith.constant 10 : index
    %37 = vector.load %arg3[%c0_17, %c10] : memref<8x40xf32, #tpu.memory_space<vmem>>, vector<8x3xf32>
    tpu.vector_store %arg3[%c0_17, %c10], %36 {strides = array<i32>} : memref<8x40xf32, #tpu.memory_space<vmem>>, vector<8x3xf32>,
    %38 = vector.extract_strided_slice %17 {offsets = [0, 5], sizes = [8, 1], strides = [1, 1]} : vector<8x16xf32> to vector<8x1xf32>
    %39 = vector.shape_cast %38 : vector<8x1xf32> to vector<8x1xf32>
    %40 = vector.broadcast %39 : vector<8x1xf32> to vector<8x2xf32>
    %c0_18 = arith.constant 0 : index
    %c13 = arith.constant 13 : index
    %41 = vector.load %arg3[%c0_18, %c13] : memref<8x40xf32, #tpu.memory_space<vmem>>, vector<8x2xf32>
    tpu.vector_store %arg3[%c0_18, %c13], %40 {strides = array<i32>} : memref<8x40xf32, #tpu.memory_space<vmem>>, vector<8x2xf32>,
    %42 = vector.extract_strided_slice %17 {offsets = [0, 6], sizes = [8, 1], strides = [1, 1]} : vector<8x16xf32> to vector<8x1xf32>
    %43 = vector.shape_cast %42 : vector<8x1xf32> to vector<8x1xf32>
    %44 = vector.broadcast %43 : vector<8x1xf32> to vector<8x3xf32>
    %c0_19 = arith.constant 0 : index
    %c15 = arith.constant 15 : index
    %45 = vector.load %arg3[%c0_19, %c15] : memref<8x40xf32, #tpu.memory_space<vmem>>, vector<8x3xf32>
    tpu.vector_store %arg3[%c0_19, %c15], %44 {strides = array<i32>} : memref<8x40xf32, #tpu.memory_space<vmem>>, vector<8x3xf32>,
    %46 = vector.extract_strided_slice %17 {offsets = [0, 7], sizes = [8, 1], strides = [1, 1]} : vector<8x16xf32> to vector<8x1xf32>
    %47 = vector.shape_cast %46 : vector<8x1xf32> to vector<8x1xf32>
    %48 = vector.broadcast %47 : vector<8x1xf32> to vector<8x2xf32>
    %c0_20 = arith.constant 0 : index
    %c18 = arith.constant 18 : index
    %49 = vector.load %arg3[%c0_20, %c18] : memref<8x40xf32, #tpu.memory_space<vmem>>, vector<8x2xf32>
    tpu.vector_store %arg3[%c0_20, %c18], %48 {strides = array<i32>} : memref<8x40xf32, #tpu.memory_space<vmem>>, vector<8x2xf32>,
    %50 = vector.extract_strided_slice %17 {offsets = [0, 8], sizes = [8, 1], strides = [1, 1]} : vector<8x16xf32> to vector<8x1xf32>
    %51 = vector.shape_cast %50 : vector<8x1xf32> to vector<8x1xf32>
    %52 = vector.broadcast %51 : vector<8x1xf32> to vector<8x3xf32>
    %c0_21 = arith.constant 0 : index
    %c20 = arith.constant 20 : index
    %53 = vector.load %arg3[%c0_21, %c20] : memref<8x40xf32, #tpu.memory_space<vmem>>, vector<8x3xf32>
    tpu.vector_store %arg3[%c0_21, %c20], %52 {strides = array<i32>} : memref<8x40xf32, #tpu.memory_space<vmem>>, vector<8x3xf32>,
    %54 = vector.extract_strided_slice %17 {offsets = [0, 9], sizes = [8, 1], strides = [1, 1]} : vector<8x16xf32> to vector<8x1xf32>
    %55 = vector.shape_cast %54 : vector<8x1xf32> to vector<8x1xf32>
    %56 = vector.broadcast %55 : vector<8x1xf32> to vector<8x2xf32>
    %c0_22 = arith.constant 0 : index
    %c23 = arith.constant 23 : index
    %57 = vector.load %arg3[%c0_22, %c23] : memref<8x40xf32, #tpu.memory_space<vmem>>, vector<8x2xf32>
    tpu.vector_store %arg3[%c0_22, %c23], %56 {strides = array<i32>} : memref<8x40xf32, #tpu.memory_space<vmem>>, vector<8x2xf32>,
    %58 = vector.extract_strided_slice %17 {offsets = [0, 10], sizes = [8, 1], strides = [1, 1]} : vector<8x16xf32> to vector<8x1xf32>
    %59 = vector.shape_cast %58 : vector<8x1xf32> to vector<8x1xf32>
    %60 = vector.broadcast %59 : vector<8x1xf32> to vector<8x3xf32>
    %c0_23 = arith.constant 0 : index
    %c25 = arith.constant 25 : index
    %61 = vector.load %arg3[%c0_23, %c25] : memref<8x40xf32, #tpu.memory_space<vmem>>, vector<8x3xf32>
    tpu.vector_store %arg3[%c0_23, %c25], %60 {strides = array<i32>} : memref<8x40xf32, #tpu.memory_space<vmem>>, vector<8x3xf32>,
    %62 = vector.extract_strided_slice %17 {offsets = [0, 11], sizes = [8, 1], strides = [1, 1]} : vector<8x16xf32> to vector<8x1xf32>
    %63 = vector.shape_cast %62 : vector<8x1xf32> to vector<8x1xf32>
    %64 = vector.broadcast %63 : vector<8x1xf32> to vector<8x2xf32>
    %c0_24 = arith.constant 0 : index
    %c28 = arith.constant 28 : index
    %65 = vector.load %arg3[%c0_24, %c28] : memref<8x40xf32, #tpu.memory_space<vmem>>, vector<8x2xf32>
    tpu.vector_store %arg3[%c0_24, %c28], %64 {strides = array<i32>} : memref<8x40xf32, #tpu.memory_space<vmem>>, vector<8x2xf32>,
    %66 = vector.extract_strided_slice %17 {offsets = [0, 12], sizes = [8, 1], strides = [1, 1]} : vector<8x16xf32> to vector<8x1xf32>
    %67 = vector.shape_cast %66 : vector<8x1xf32> to vector<8x1xf32>
    %68 = vector.broadcast %67 : vector<8x1xf32> to vector<8x3xf32>
    %c0_25 = arith.constant 0 : index
    %c30 = arith.constant 30 : index
    %69 = vector.load %arg3[%c0_25, %c30] : memref<8x40xf32, #tpu.memory_space<vmem>>, vector<8x3xf32>
    tpu.vector_store %arg3[%c0_25, %c30], %68 {strides = array<i32>} : memref<8x40xf32, #tpu.memory_space<vmem>>, vector<8x3xf32>,
    %70 = vector.extract_strided_slice %17 {offsets = [0, 13], sizes = [8, 1], strides = [1, 1]} : vector<8x16xf32> to vector<8x1xf32>
    %71 = vector.shape_cast %70 : vector<8x1xf32> to vector<8x1xf32>
    %72 = vector.broadcast %71 : vector<8x1xf32> to vector<8x2xf32>
    %c0_26 = arith.constant 0 : index
    %c33 = arith.constant 33 : index
    %73 = vector.load %arg3[%c0_26, %c33] : memref<8x40xf32, #tpu.memory_space<vmem>>, vector<8x2xf32>
    tpu.vector_store %arg3[%c0_26, %c33], %72 {strides = array<i32>} : memref<8x40xf32, #tpu.memory_space<vmem>>, vector<8x2xf32>,
    %74 = vector.extract_strided_slice %17 {offsets = [0, 14], sizes = [8, 1], strides = [1, 1]} : vector<8x16xf32> to vector<8x1xf32>
    %75 = vector.shape_cast %74 : vector<8x1xf32> to vector<8x1xf32>
    %76 = vector.broadcast %75 : vector<8x1xf32> to vector<8x3xf32>
    %c0_27 = arith.constant 0 : index
    %c35 = arith.constant 35 : index
    %77 = vector.load %arg3[%c0_27, %c35] : memref<8x40xf32, #tpu.memory_space<vmem>>, vector<8x3xf32>
    tpu.vector_store %arg3[%c0_27, %c35], %76 {strides = array<i32>} : memref<8x40xf32, #tpu.memory_space<vmem>>, vector<8x3xf32>,
    %78 = vector.extract_strided_slice %17 {offsets = [0, 15], sizes = [8, 1], strides = [1, 1]} : vector<8x16xf32> to vector<8x1xf32>
    %79 = vector.shape_cast %78 : vector<8x1xf32> to vector<8x1xf32>
    %80 = vector.broadcast %79 : vector<8x1xf32> to vector<8x2xf32>
    %c0_28 = arith.constant 0 : index
    %c38 = arith.constant 38 : index
    %81 = vector.load %arg3[%c0_28, %c38] : memref<8x40xf32, #tpu.memory_space<vmem>>, vector<8x2xf32>
    tpu.vector_store %arg3[%c0_28, %c38], %80 {strides = array<i32>} : memref<8x40xf32, #tpu.memory_space<vmem>>, vector<8x2xf32>,
    return
  }
}

</mosaic_0001>

<llo_original>
// kernel: squeeze.2
$region0: #{squeeze.2}
  %s0 = inlined_call_operand.vmem [shape: f32[2,4,40], index: 0, kind: input, shape index: {}]
  %s1 = inlined_call_operand.vmem [shape: f32[2,4,8,5], index: 1, kind: output, shape index: {}]
  $region1: #{squeeze.2} parent=0
    #allocation0 [shape = 'u8[8192]{0}', space=vmem, size = 0x2000, scoped, tag = 'scoped mem for input reshape']
    %s3 = sshllo.u32 0, 4
    %s4 = scalar_lea.vmem %s0, 4
    %v5 = vld [vmem:[%s4] sm:%s3]
    %s6 = scalar_lea.vmem [#allocation0], 8
    %7 = vst [vmem:[%s6] sm:%s3] %v5
    %v8 = vld [vmem:[%s0] sm:%s3]
    %9 = vst [vmem:[#allocation0] sm:%s3] %v8
    %v10 = vld [vmem:[#allocation0] sm:$0xf]
    %vm11 = vcmask 39936
    %12 = vst.msk [vmem:[%s1] ss:$8 sm:$0xf] %vm11, %v10
    %s13 = scalar_lea.vmem [#allocation0], 8
    %v14 = vld [vmem:[%s13] sm:$0xf]
    %vm15 = vcmask 39936
    %s16 = scalar_lea.vmem %s1, 32
    %17 = vst.msk [vmem:[%s16] ss:$8 sm:$0xf] %vm15, %v14
    %v18 = vld.sshfl [vmem:[#allocation0] sm:$0xff pattern:$0xba983210]
    %19 = vrot.lane.b32.xlu0 %v18, 123
    %v20 = vpop.permute.xlu0 %19
    %vm21 = vcmask 39936
    %s22 = scalar_lea.vmem %s1, 1
    %23 = vst.msk [vmem:[%s22] ss:$8 sm:$0xf] %vm21, %v20
    %s24 = scalar_lea.vmem %s1, 1
    %25 = vst.msk [vmem:[%s24] ss:$8 sm:$0xf0] %vm21, %v20
    %v26 = vld.sshfl [vmem:[#allocation0] sm:$0xff pattern:$0xba983210]
    %27 = vrot.lane.b32.xlu0 %v26, 118
    %v28 = vpop.permute.xlu0 %27
    %vm29 = vcmask 39936
    %s30 = scalar_lea.vmem %s1, 2
    %31 = vst.msk [vmem:[%s30] ss:$8 sm:$0xf] %vm29, %v28
    %s32 = scalar_lea.vmem %s1, 2
    %33 = vst.msk [vmem:[%s32] ss:$8 sm:$0xf0] %vm29, %v28
    %v34 = vld.sshfl [vmem:[#allocation0] sm:$0xff pattern:$0xba983210]
    %35 = vrot.lane.b32.xlu0 %v34, 113
    %v36 = vpop.permute.xlu0 %35
    %vm37 = vcmask 39936
    %s38 = scalar_lea.vmem %s1, 3
    %39 = vst.msk [vmem:[%s38] ss:$8 sm:$0xf] %vm37, %v36
    %s40 = scalar_lea.vmem %s1, 3
    %41 = vst.msk [vmem:[%s40] ss:$8 sm:$0xf0] %vm37, %v36
    %v42 = vld.sshfl [vmem:[#allocation0] sm:$0xff pattern:$0xba983210]
    %43 = vrot.lane.b32.xlu0 %v42, 108
    %v44 = vpop.permute.xlu0 %43
    %vm45 = vcmask 39936
    %s46 = scalar_lea.vmem %s1, 4
    %47 = vst.msk [vmem:[%s46] ss:$8 sm:$0xf] %vm45, %v44
    %s48 = scalar_lea.vmem %s1, 4
    %49 = vst.msk [vmem:[%s48] ss:$8 sm:$0xf0] %vm45, %v44
    %v50 = vld.sshfl [vmem:[#allocation0] sm:$0xff pattern:$0xba983210]
    %51 = vrot.lane.b32.xlu0 %v50, 103
    %v52 = vpop.permute.xlu0 %51
    %vm53 = vcmask 39936
    %s54 = scalar_lea.vmem %s1, 5
    %55 = vst.msk [vmem:[%s54] ss:$8 sm:$0xf] %vm53, %v52
    %s56 = scalar_lea.vmem %s1, 5
    %57 = vst.msk [vmem:[%s56] ss:$8 sm:$0xf0] %vm53, %v52
    %v58 = vld.sshfl [vmem:[#allocation0] sm:$0xff pattern:$0xba983210]
    %59 = vrot.lane.b32.xlu0 %v58, 98
    %v60 = vpop.permute.xlu0 %59
    %vm61 = vcmask 39936
    %s62 = scalar_lea.vmem %s1, 6
    %63 = vst.msk [vmem:[%s62] ss:$8 sm:$0xf] %vm61, %v60
    %s64 = scalar_lea.vmem %s1, 6
    %65 = vst.msk [vmem:[%s64] ss:$8 sm:$0xf0] %vm61, %v60
    %v66 = vld.sshfl [vmem:[#allocation0] sm:$0xff pattern:$0xba983210]
    %67 = vrot.lane.b32.xlu0 %v66, 93
    %v68 = vpop.permute.xlu0 %67
    %vm69 = vcmask 39936
    %s70 = scalar_lea.vmem %s1, 7
    %71 = vst.msk [vmem:[%s70] ss:$8 sm:$0xf] %vm69, %v68
    %s72 = scalar_lea.vmem %s1, 7
    %73 = vst.msk [vmem:[%s72] ss:$8 sm:$0xf0] %vm69, %v68

// kernel: ms_block_forward.1
$region0: #{ms_block_forward.1}
  #allocation0 [shape = 'u32[]', space=smem, size = 0x4, offset = 0x4, fixed_abs, tag = 'smem constant byte address 0x4 - core index']
  #allocation1 [shape = 'u32[144,128]{1,0:T(1,128)}', space=vmem, size = 0x12000, scoped, tag = 'internal scratch']
  %s0 = inlined_call_operand.vmem [shape: f32[20,16], index: 0, kind: input, shape index: {}]
  %s1 = inlined_call_operand.vmem [shape: f32[8,4], index: 1, kind: input, shape index: {}]
  %s2 = inlined_call_operand.vmem [shape: f32[8,1], index: 2, kind: input, shape index: {}]
  %s3 = inlined_call_operand.vmem [shape: f32[8,40], index: 3, kind: output, shape index: {}]
  %s4 = sld [smem:[#allocation0]]
  $region22: #{ms_block_forward.1} parent=0
    _
  %s6 = ssub.s32 1, %s4
  %s7 = scalar_select 0, %s6, %s4
  // Predicated region
  $region2: #{ms_block_forward.1} parent=0 // pred_check
    _
  $region3: #{ms_block_forward.1} parent=0 // pred_check_branch
    %9 = sbr.rel (0) target = $region5
  $region4: #{ms_block_forward.1} parent=0 // pred_region
    _
  $region5: #{ms_block_forward.1} parent=0 // pred_fallthru
    _
  // Predicated region
  $region6: #{ms_block_forward.1} parent=0 // pred_check
    _
  $region7: #{ms_block_forward.1} parent=0 // pred_check_branch
    %11 = sbr.rel (0) target = $region9
  $region8: #{ms_block_forward.1} parent=0 // pred_region
    _
  $region9: #{ms_block_forward.1} parent=0 // pred_fallthru
    _
  // Predicated region
  $region10: #{ms_block_forward.1} parent=0 // pred_check
    _
  $region11: #{ms_block_forward.1} parent=0 // pred_check_branch
    %13 = sbr.rel (0) target = $region13
  $region12: #{ms_block_forward.1} parent=0 // pred_region
    _
  $region13: #{ms_block_forward.1} parent=0 // pred_fallthru
    _
  %v14 = vld [vmem:[%s0] sm:$0xf]
  %v15 = vld [vmem:[%s0 + $0x4] sm:$0xf]
  %v16 = vadd.f32 %v14, %v15
  %v17 = vld [vmem:[%s0 + $0x8] sm:$0xf]
  %v18 = vadd.f32 %v16, %v17
  %v19 = vld [vmem:[%s0 + $0xc] sm:$0xf]
  %v20 = vadd.f32 %v18, %v19
  %v21 = vld [vmem:[%s0 + $0x10] sm:$0xf]
  %v22 = vadd.f32 %v20, %v21
  %v23 = vmul.f32 %v22, 0.2
  %v24 = vld [vmem:[%s1] sm:$0xff]
  %v25 = vld [vmem:[%s2] sm:$0xff]
  %27 = vset.pattern.permute.xlu0 0
  %28 = vperm.xlu0 %27, %v25
  %v29 = vpop.permute.xlu0 %28
  %vm31 = vcmask 31744
  %v33 = vsel %vm31, %v24, 0
  %vm35 = vcmask 1043456
  %v37 = vsel %vm35, %v23, 0
  %39 = vmatprep.subr.mxu0 0.0
  %40 = vmatpush1.msra.mxu0 %v37
  %41 = vmatprep.subr.mxu0 0.0
  %42 = vmatpush1.msra.mxu0 0.0
  %43 = vmatprep.subr.mxu0 0.0
  %44 = vmatpush1.msra.mxu0 0.0
  %45 = vmatprep.subr.mxu0 0.0
  %46 = vmatpush1.msra.mxu0 0.0
  %47 = vmatprep.subr.mxu0 0.0
  %48 = vmatpush1.msra.mxu0 0.0
  %49 = vmatprep.subr.mxu0 0.0
  %50 = vmatpush1.msra.mxu0 0.0
  %51 = vmatprep.subr.mxu0 0.0
  %52 = vmatpush1.msra.mxu0 0.0
  %53 = vmatprep.subr.mxu0 0.0
  %54 = vmatpush1.msra.mxu0 0.0
  %55 = vmatprep.subr.mxu0 0.0
  %56 = vmatpush1.msra.mxu0 0.0
  %57 = vmatprep.subr.mxu0 0.0
  %58 = vmatpush1.msra.mxu0 0.0
  %59 = vmatprep.subr.mxu0 0.0
  %60 = vmatpush1.msra.mxu0 0.0
  %61 = vmatprep.subr.mxu0 0.0
  %62 = vmatpush1.msra.mxu0 0.0
  %63 = vmatprep.subr.mxu0 0.0
  %64 = vmatpush1.msra.mxu0 0.0
  %65 = vmatprep.subr.mxu0 0.0
  %66 = vmatpush1.msra.mxu0 0.0
  %67 = vmatprep.subr.mxu0 0.0
  %68 = vmatpush1.msra.mxu0 0.0
  %69 = vmatprep.subr.mxu0 0.0
  %70 = vmatpush1.msra.mxu0 0.0
  %71 = vmatprep.subr.mxu0 0.0
  %72 = vmatpush1.msra.mxu0 0.0
  %73 = vmatprep.subr.mxu0 0.0
  %74 = vmatpush1.msra.mxu0 0.0
  %75 = vmatprep.subr.mxu0 0.0
  %76 = vmatpush1.msra.mxu0 0.0
  %77 = vmatprep.subr.mxu0 0.0
  %78 = vmatpush1.msra.mxu0 0.0
  %79 = vmatprep.subr.mxu0 0.0
  %80 = vmatpush1.msra.mxu0 0.0
  %81 = vmatprep.subr.mxu0 0.0
  %82 = vmatpush1.msra.mxu0 0.0
  %83 = vmatprep.subr.mxu0 0.0
  %84 = vmatpush1.msra.mxu0 0.0
  %85 = vmatprep.subr.mxu0 0.0
  %86 = vmatpush1.msra.mxu0 0.0
  %87 = vmatprep.subr.mxu0 0.0
  %88 = vmatpush1.msra.mxu0 0.0
  %89 = vmatprep.subr.mxu0 0.0
  %90 = vmatpush1.msra.mxu0 0.0
  %91 = vmatprep.subr.mxu0 0.0
  %92 = vmatpush1.msra.mxu0 0.0
  %93 = vmatprep.subr.mxu0 0.0
  %94 = vmatpush1.msra.mxu0 0.0
  %95 = vmatprep.subr.mxu0 0.0
  %96 = vmatpush1.msra.mxu0 0.0
  %97 = vmatprep.subr.mxu0 0.0
  %98 = vmatpush1.msra.mxu0 0.0
  %99 = vmatprep.subr.mxu0 0.0
  %100 = vmatpush1.msra.mxu0 0.0
  %101 = vmatprep.subr.mxu0 0.0
  %102 = vmatpush1.msra.mxu0 0.0
  %103 = vmatprep.mubr.f32.mxu0 0.0
  %104 = vmatmul.mubr.f32.gmra.mrb[0].mxu0 %v33
  %v105 = vpop.f32.mrb[0].mxu0
  %v106 = vadd.f32 %v29, %v105
  %v107 = vpop.f32.mrb[0].mxu0
  %108 = vdwg.mxu0
  %v109 = vmax.f32 %v106, 0.0
  %111 = vset.pattern.permute.xlu0 0
  %112 = vperm.xlu0 %111, %v109
  %v113 = vpop.permute.xlu0 %112
  %vm115 = vcmask 23552
  %116 = vst.msk [vmem:[%s3] sm:$0xff] %vm115, %v113
  %117 = vset.pattern.permute.xlu0 1
  %118 = vperm.xlu0 %117, %v109
  %v119 = vpop.permute.xlu0 %118
  %vm121 = vcmask 39960
  %122 = vst.msk [vmem:[%s3] sm:$0xff] %vm121, %v119
  %123 = vset.pattern.permute.xlu0 2
  %124 = vperm.xlu0 %123, %v109
  %v125 = vpop.permute.xlu0 %124
  %vm127 = vcmask 64552
  %128 = vst.msk [vmem:[%s3] sm:$0xff] %vm127, %v125
  %129 = vset.pattern.permute.xlu0 3
  %130 = vperm.xlu0 %129, %v109
  %v131 = vpop.permute.xlu0 %130
  %vm133 = vcmask 80960
  %134 = vst.msk [vmem:[%s3] sm:$0xff] %vm133, %v131
  %135 = vset.pattern.permute.xlu0 4
  %136 = vperm.xlu0 %135, %v109
  %v137 = vpop.permute.xlu0 %136
  %vm139 = vcmask 105552
  %140 = vst.msk [vmem:[%s3] sm:$0xff] %vm139, %v137
  %141 = vset.pattern.permute.xlu0 5
  %142 = vperm.xlu0 %141, %v109
  %v143 = vpop.permute.xlu0 %142
  %vm145 = vcmask 121960
  %146 = vst.msk [vmem:[%s3] sm:$0xff] %vm145, %v143
  %147 = vset.pattern.permute.xlu0 6
  %148 = vperm.xlu0 %147, %v109
  %v149 = vpop.permute.xlu0 %148
  %vm151 = vcmask 146552
  %152 = vst.msk [vmem:[%s3] sm:$0xff] %vm151, %v149
  %153 = vset.pattern.permute.xlu0 7
  %154 = vperm.xlu0 %153, %v109
  %v155 = vpop.permute.xlu0 %154
  %vm157 = vcmask 162960
  %158 = vst.msk [vmem:[%s3] sm:$0xff] %vm157, %v155
  %159 = vset.pattern.permute.xlu0 8
  %160 = vperm.xlu0 %159, %v109
  %v161 = vpop.permute.xlu0 %160
  %vm163 = vcmask 187552
  %164 = vst.msk [vmem:[%s3] sm:$0xff] %vm163, %v161
  %165 = vset.pattern.permute.xlu0 9
  %166 = vperm.xlu0 %165, %v109
  %v167 = vpop.permute.xlu0 %166
  %vm169 = vcmask 203960
  %170 = vst.msk [vmem:[%s3] sm:$0xff] %vm169, %v167
  %171 = vset.pattern.permute.xlu0 10
  %172 = vperm.xlu0 %171, %v109
  %v173 = vpop.permute.xlu0 %172
  %vm175 = vcmask 228552
  %176 = vst.msk [vmem:[%s3] sm:$0xff] %vm175, %v173
  %177 = vset.pattern.permute.xlu0 11
  %178 = vperm.xlu0 %177, %v109
  %v179 = vpop.permute.xlu0 %178
  %vm181 = vcmask 244960
  %182 = vst.msk [vmem:[%s3] sm:$0xff] %vm181, %v179
  %183 = vset.pattern.permute.xlu0 12
  %184 = vperm.xlu0 %183, %v109
  %v185 = vpop.permute.xlu0 %184
  %vm187 = vcmask 269552
  %188 = vst.msk [vmem:[%s3] sm:$0xff] %vm187, %v185
  %189 = vset.pattern.permute.xlu0 13
  %190 = vperm.xlu0 %189, %v109
  %v191 = vpop.permute.xlu0 %190
  %vm193 = vcmask 285960
  %194 = vst.msk [vmem:[%s3] sm:$0xff] %vm193, %v191
  %195 = vset.pattern.permute.xlu0 14
  %196 = vperm.xlu0 %195, %v109
  %v197 = vpop.permute.xlu0 %196
  %vm199 = vcmask 310552
  %200 = vst.msk [vmem:[%s3] sm:$0xff] %vm199, %v197
  %201 = vset.pattern.permute.xlu0 15
  %202 = vperm.xlu0 %201, %v109
  %v203 = vpop.permute.xlu0 %202
  %vm205 = vcmask 326960
  %206 = vst.msk [vmem:[%s3] sm:$0xff] %vm205, %v203
  // Predicated region
  $region14: #{ms_block_forward.1} parent=0 // pred_check
    _
  $region15: #{ms_block_forward.1} parent=0 // pred_check_branch
    %208 = sbr.rel (0) target = $region17
  $region16: #{ms_block_forward.1} parent=0 // pred_region
    _
  $region17: #{ms_block_forward.1} parent=0 // pred_fallthru
    _
  // Predicated region
  $region18: #{ms_block_forward.1} parent=0 // pred_check
    _
  $region19: #{ms_block_forward.1} parent=0 // pred_check_branch
    %210 = sbr.rel (0) target = $region21
  $region20: #{ms_block_forward.1} parent=0 // pred_region
    _
  $region21: #{ms_block_forward.1} parent=0 // pred_fallthru
    _

</llo_original>
